<compile_context>
chip_gen: v7x
topology: tpu7x:2x2x1
jax: 0.10.0
libtpu: 0.0.40
codegen_flags: <defaults>
</compile_context>

<pallas_src>
import math
import functools

import jax
import jax.numpy as jnp
from jax import lax
from jax.experimental import pallas as pl
from jax.experimental.pallas import tpu as pltpu


# -----------------------------------------------------------------------------
# Path A: small tables — table resident in VMEM, one-hot MXU gather.
# -----------------------------------------------------------------------------
def _embedding_small_table_kernel(ids_ref, table_ref, out_ref, *, scale):
    # ids_ref:   (tile, 1)        int32 VMEM
    # table_ref: (vocab, d_model) VMEM  (constant block index -> stays resident)
    # out_ref:   (tile, d_model)  VMEM
    vocab = table_ref.shape[0]
    tile = ids_ref.shape[0]
    ids = ids_ref[...]                                              # (tile, 1)
    onehot = (ids == lax.broadcasted_iota(jnp.int32, (tile, vocab), 1)
              ).astype(table_ref.dtype)                             # (tile, vocab)
    acc = jnp.dot(onehot, table_ref[...], preferred_element_type=jnp.float32)
    out_ref[...] = (acc * scale).astype(out_ref.dtype)


# -----------------------------------------------------------------------------
# Path B: large tables — per-row HBM DMA gather straight into the output block.
# -----------------------------------------------------------------------------
def _embedding_dma_gather_kernel(ids_ref, table_hbm, out_ref, sem, *,
                                 tile, rem, scale, unroll):
    # ids_ref:   (n,)              int32 SMEM (scalar prefetch, full array)
    # table_hbm: (vocab, d_model)  HBM   (pl.ANY -> no auto-DMA, never in VMEM)
    # out_ref:   (tile, d_model)   VMEM  (pipelined output block; gather target)
    # sem:       single DMA semaphore shared by all row copies of this tile
    d_model = out_ref.shape[1]
    base = pl.program_id(0) * tile

    def issue_rows(count):
        # All SMEM id reads happen before any .wait(); partial unroll keeps the
        # scalar / vector-misc slots fed while descriptors are built.
        def body(t, carry):
            tok = ids_ref[base + t]
            pltpu.make_async_copy(table_hbm.at[pl.ds(tok, 1)],
                                  out_ref.at[pl.ds(t, 1)],
                                  sem).start()
            return carry
        lax.fori_loop(0, count, body, 0, unroll=max(1, min(unroll, count)))

    def wait_rows(count):
        # Single aggregated wait: the DMA semaphore counts bytes, so one
        # descriptor sized to `count` rows matches `count` per-row copies.
        dst = out_ref if count == tile else out_ref.at[pl.ds(0, count)]
        src = table_hbm.at[pl.ds(0, count)] if count <= table_hbm.shape[0] else dst
        pltpu.make_async_copy(src, dst, sem).wait()

    if rem == 0:
        issue_rows(tile)
        wait_rows(tile)
    else:
        last = pl.num_programs(0) - 1

        @pl.when(pl.program_id(0) != last)
        def _():
            issue_rows(tile)
            wait_rows(tile)

        @pl.when(pl.program_id(0) == last)
        def _():
            # Only the valid tail rows are gathered; padded rows are zeroed
            # (they are sliced off in the wrapper), no wasted HBM traffic.
            issue_rows(rem)
            wait_rows(rem)
            out_ref[pl.ds(rem, tile - rem), :] = jnp.zeros(
                (tile - rem, d_model), out_ref.dtype)

    # Fused sqrt(d_model) scale — VPU work hides under the DMA time.
    out_ref[...] = out_ref[...] * scale


def _vmem_limit(bytes_needed):
    # Derived from live buffer sizes instead of a hard-coded constant; capped at
    # 32 MiB so it stays safe on v7x (64 MiB physical VMEM per TensorCore).
    return int(min(32 * 1024 * 1024, max(16 * 1024 * 1024, 2 * bytes_needed)))


def input_embeddings(x, table, *, tile_tokens=512, force_dma_gather=False):
    """Embedding lookup fused with the sqrt(d_model) scale.

    x:     integer token ids, any shape (e.g. (batch, seq)).
    table: (vocab_size, d_model) embedding matrix (nn.Embedding.weight).
    Returns an array of shape x.shape + (d_model,) in table.dtype.
    """
    vocab_size, d_model = table.shape
    scale = math.sqrt(d_model)                     # uses the *original* d_model
    itemsize = jnp.dtype(table.dtype).itemsize
    row_bytes = d_model * itemsize

    lead_shape = x.shape
    n = int(math.prod(lead_shape)) if lead_shape else 1
    ids = x.reshape(n).astype(jnp.int32)
    # TODO(synk): PyTorch nn.Embedding raises on out-of-range ids; clamp instead so
    # no out-of-bounds HBM access can ever be issued.
    ids = jnp.clip(ids, 0, vocab_size - 1)

    # --- tiling over tokens ---------------------------------------------------
    # Cap the per-tile output buffer at ~8 MiB so the double-buffered output
    # pipeline stays inside v7x's scoped VMEM; larger tiles amortize per-step
    # overhead on v5e/v6e (raise tile_tokens there if desired).
    max_tile = max(8, (8 * 1024 * 1024 // row_bytes) // 8 * 8)
    tile = min(tile_tokens, max_tile)
    if n <= tile:
        tile = n                                   # single full block (any n legal)
        grid = 1
    else:
        tile = max(8, (tile // 8) * 8)             # sublane-aligned blocks
        grid = pl.cdiv(n, tile)
    n_pad = grid * tile
    rem = n % tile                                 # static; 0 when tiles divide n

    small_table = (not force_dma_gather
                   and vocab_size <= 2048
                   and vocab_size * row_bytes <= 4 * 1024 * 1024)

    if small_table:
        # --- Path A: in-VMEM table, one-hot MXU gather ------------------------
        ids2d = ids.reshape(n, 1)
        if n_pad != n:
            ids2d = jnp.pad(ids2d, ((0, n_pad - n), (0, 0)))  # pad rows -> id 0
        needed = (2 * tile * row_bytes               # out pipeline (2 buffers)
                  + 2 * vocab_size * row_bytes       # resident table
                  + tile * vocab_size * 4            # one-hot intermediate
                  + 2 * tile * 4)                    # ids blocks
        kernel = functools.partial(_embedding_small_table_kernel, scale=scale)
        out = pl.pallas_call(
            kernel,
            out_shape=jax.ShapeDtypeStruct((n_pad, d_model), table.dtype),
            grid=(grid,),
            in_specs=[
                pl.BlockSpec((tile, 1), lambda i: (i, 0)),
                pl.BlockSpec((vocab_size, d_model), lambda i: (0, 0)),
            ],
            out_specs=pl.BlockSpec((tile, d_model), lambda i: (i, 0)),
            compiler_params=pltpu.CompilerParams(
                dimension_semantics=("parallel",),
                vmem_limit_bytes=_vmem_limit(needed),
            ),
        )(ids2d, table)
    else:
        # --- Path B: HBM table, per-row DMA gather into the output block -----
        needed = 2 * tile * row_bytes                # out pipeline (2 buffers)
        kernel = functools.partial(_embedding_dma_gather_kernel,
                                   tile=tile, rem=rem, scale=scale, unroll=8)
        out = pl.pallas_call(
            kernel,
            out_shape=jax.ShapeDtypeStruct((n_pad, d_model), table.dtype),
            grid_spec=pltpu.PrefetchScalarGridSpec(
                num_scalar_prefetch=1,               # ids -> SMEM
                grid=(grid,),
                in_specs=[pl.BlockSpec(memory_space=pl.ANY)],   # table stays in HBM
                out_specs=pl.BlockSpec((tile, d_model), lambda i, ids: (i, 0)),
                scratch_shapes=[pltpu.SemaphoreType.DMA],
            ),
            compiler_params=pltpu.CompilerParams(
                dimension_semantics=("parallel",),   # tiles shared across TCs (v7x)
                vmem_limit_bytes=_vmem_limit(needed),
            ),
        )(ids, table)

    if n_pad != n:
        out = out[:n]                                # rows only; no feature slice
    return out.reshape(*lead_shape, d_model)


if __name__ == "__main__":
    d_model = 32
    vocab_size = 64
    batch, seq = 2, 8

    key = jax.random.PRNGKey(0)
    k_table, k_ids = jax.random.split(key)

    # nn.Embedding default init: weight ~ N(0, 1)
    table = jax.random.normal(k_table, (vocab_size, d_model), dtype=jnp.float32)
    x = jax.random.randint(k_ids, (batch, seq), 0, vocab_size, dtype=jnp.int32)

    ref = jnp.take(table, x, axis=0) * jnp.float32(math.sqrt(d_model))

    # 1) Small-table fast path (in-VMEM gather).
    out_fast = jax.block_until_ready(input_embeddings(x, table))
    assert out_fast.shape == (batch, seq, d_model)
    assert jnp.allclose(out_fast, ref, atol=1e-5, rtol=1e-5)

    # 2) Large-vocab path (per-row HBM DMA gather), exercised at the same shapes.
    out_dma = jax.block_until_ready(input_embeddings(x, table, force_dma_gather=True))
    assert jnp.allclose(out_dma, ref, atol=1e-5, rtol=1e-5)

    # 3) DMA path with a partial last tile (exercises the tail handling).
    x2 = jax.random.randint(k_ids, (2, 5), 0, vocab_size, dtype=jnp.int32)
    ref2 = jnp.take(table, x2, axis=0) * jnp.float32(math.sqrt(d_model))
    out_tail = jax.block_until_ready(
        input_embeddings(x2, table, tile_tokens=8, force_dma_gather=True))
    assert jnp.allclose(out_tail, ref2, atol=1e-5, rtol=1e-5)

    print("KERNEL_OK")
</pallas_src>

<mosaic_0001>
module attributes {stable_mosaic.version = 11 : i64} {
  func.func @_embedding_small_table_kernel(%arg0: i32, %arg1: memref<16x1xi32, #tpu.memory_space<vmem>>, %arg2: memref<64x32xf32, #tpu.memory_space<vmem>>, %arg3: memref<16x32xf32, #tpu.memory_space<vmem>>) attributes {dimension_semantics = [#tpu.dimension_semantics<parallel>], iteration_bounds = array<i64: 1>, scalar_prefetch = 0 : i64, scratch_operands = 0 : i64, tpu.core_type = #tpu.core_type<tc>, window_params = [{transform_indices = @transform_0, window_bounds = array<i64: 16, 1>}, {pipeline_mode = #tpu.pipeline_mode<synchronous>, transform_indices = @transform_1, window_bounds = array<i64: 64, 32>}, {transform_indices = @transform_2, window_bounds = array<i64: 16, 32>}]} {
    %c0 = arith.constant 0 : index
    %c0_0 = arith.constant 0 : index
    %0 = vector.load %arg1[%c0, %c0_0] : memref<16x1xi32, #tpu.memory_space<vmem>>, vector<16x1xi32>
    %1 = tpu.iota {dimensions = array<i32: 1>} : vector<16x64xi32>
    %2 = vector.broadcast %0 : vector<16x1xi32> to vector<16x64xi32>
    %3 = arith.cmpi eq, %2, %1 : vector<16x64xi32>
    %4 = arith.extui %3 : vector<16x64xi1> to vector<16x64xi32>
    %5 = arith.sitofp %4 : vector<16x64xi32> to vector<16x64xf32>
    %c0_1 = arith.constant 0 : index
    %c0_2 = arith.constant 0 : index
    %6 = vector.load %arg2[%c0_1, %c0_2] : memref<64x32xf32, #tpu.memory_space<vmem>>, vector<64x32xf32>
    %cst = arith.constant dense<0.000000e+00> : vector<16x32xf32>
    %7 = tpu.matmul %5, %6, %cst {dimension_numbers = #tpu.dot_dimension_numbers<[1], [0], [0], [1], [0, 0, 1, 1], [], []>} : vector<16x64xf32>, vector<64x32xf32>, vector<16x32xf32> -> vector<16x32xf32>
    %cst_3 = arith.constant 5.65685415 : f32
    %8 = vector.broadcast %cst_3 : f32 to vector<16x32xf32>
    %9 = arith.mulf %7, %8 : vector<16x32xf32>
    %c0_4 = arith.constant 0 : index
    %c0_5 = arith.constant 0 : index
    %10 = vector.load %arg3[%c0_4, %c0_5] : memref<16x32xf32, #tpu.memory_space<vmem>>, vector<16x32xf32>
    tpu.vector_store %arg3[%c0_4, %c0_5], %9 {strides = array<i32>} : memref<16x32xf32, #tpu.memory_space<vmem>>, vector<16x32xf32>,
    return
  }
  func.func @transform_0(%arg0: i32) -> (i32, i32) {
    %c0_i32 = arith.constant 0 : i32
    %c0_i32_0 = arith.constant 0 : i32
    return %arg0, %c0_i32 : i32, i32
  }
  func.func @transform_1(%arg0: i32) -> (i32, i32) {
    %c0_i32 = arith.constant 0 : i32
    %c0_i32_0 = arith.constant 0 : i32
    %c0_i32_1 = arith.constant 0 : i32
    return %c0_i32, %c0_i32_0 : i32, i32
  }
  func.func @transform_2(%arg0: i32) -> (i32, i32) {
    %c0_i32 = arith.constant 0 : i32
    %c0_i32_0 = arith.constant 0 : i32
    return %arg0, %c0_i32 : i32, i32
  }
}

</mosaic_0001>

<llo_original>
// kernel: tpu_custom_call.1
$region0: #{tpu_custom_call.1}
  #allocation0 [shape = 'u32[]', space=smem, size = 0x4, offset = 0x4, fixed_abs, tag = 'smem constant byte address 0x4 - core index']
  #allocation1 [shape = 'u32[144,128]{1,0:T(1,128)}', space=vmem, size = 0x12000, scoped, tag = 'internal scratch']
  %s0 = inlined_call_operand.vmem [shape: s32[16,1], index: 0, kind: input, shape index: {}]
  %s1 = inlined_call_operand.vmem [shape: f32[64,32], index: 1, kind: input, shape index: {}]
  %s2 = inlined_call_operand.hbm [shape: f32[16,32], index: 2, kind: output, shape index: {}]
  %s3 = sld [smem:[#allocation0]]
  $region18: #{tpu_custom_call.1} parent=0
    _
  %s5 = ssub.s32 1, %s3
  %s6 = scalar_select 0, %s5, %s3
  $region1: #{tpu_custom_call.1} parent=0
    #allocation2 [shape = 'u8[8192]{0}', space=vmem, size = 0x2000, scoped, tag = 'output window, operand 0, single buffered']
    #allocation3 [shape = 's32[1]{0}', space=sflag, size = 0x4, scoped, tag = 'scoped memory for tpu_custom_call.1']
    %7 = vsyncpa [#allocation3], 0
    // Predicated region
    $region2: #{tpu_custom_call.1} parent=1 // pred_check
      _
    $region3: #{tpu_custom_call.1} parent=1 // pred_check_branch
      %9 = sbr.rel (0) target = $region5
    $region4: #{tpu_custom_call.1} parent=1 // pred_region
      _
    $region5: #{tpu_custom_call.1} parent=1 // pred_fallthru
      _
    // Predicated region
    $region6: #{tpu_custom_call.1} parent=1 // pred_check
      _
    $region7: #{tpu_custom_call.1} parent=1 // pred_check_branch
      %11 = sbr.rel (0) target = $region9
    $region8: #{tpu_custom_call.1} parent=1 // pred_region
      _
    $region9: #{tpu_custom_call.1} parent=1 // pred_fallthru
      _
    %v12 = vld [vmem:[%s0] sm:$0xff]
    %v13 = vld [vmem:[%s0 + $0x8] sm:$0xff]
    %v14 = vlaneseq
    %v15 = vand.u32 %v14, 127
    %16 = vset.pattern.permute.xlu0 0
    %17 = vperm.xlu0 %16, %v12
    %v18 = vpop.permute.xlu0 %17
    %19 = vset.pattern.permute.xlu0 0
    %20 = vperm.xlu0 %19, %v13
    %v21 = vpop.permute.xlu0 %20
    %vm22 = vcmp.eq.s32.totalorder %v18, %v15
    %vm23 = vcmp.eq.s32.totalorder %v21, %v15
    %v24 = vsel %vm22, 1, 0
    %v25 = vsel %vm23, 1, 0
    %v26 = vcvt.s32.f32 %v24
    %v27 = vcvt.s32.f32 %v25
    %v28 = vld [vmem:[%s1] sm:$0xff]
    %v29 = vld [vmem:[%s1 + $0x8] sm:$0xff]
    %v30 = vld [vmem:[%s1 + $0x10] sm:$0xff]
    %v31 = vld [vmem:[%s1 + $0x18] sm:$0xff]
    %v32 = vld [vmem:[%s1 + $0x20] sm:$0xff]
    %v33 = vld [vmem:[%s1 + $0x28] sm:$0xff]
    %v34 = vld [vmem:[%s1 + $0x30] sm:$0xff]
    %v35 = vld [vmem:[%s1 + $0x38] sm:$0xff]
    %vm36 = vcmask 523264
    %v38 = vsel %vm36, %v26, 0
    %v41 = vsel %vm36, %v27, 0
    %43 = vmatprep.subr.mxu0 0.0
    %44 = vmatpush1.msra.mxu0 %v28
    %45 = vmatprep.subr.mxu0 0.0
    %46 = vmatpush1.msra.mxu0 %v29
    %47 = vmatprep.subr.mxu0 0.0
    %48 = vmatpush1.msra.mxu0 %v30
    %49 = vmatprep.subr.mxu0 0.0
    %50 = vmatpush1.msra.mxu0 %v31
    %51 = vmatprep.subr.mxu0 0.0
    %52 = vmatpush1.msra.mxu0 %v32
    %53 = vmatprep.subr.mxu0 0.0
    %54 = vmatpush1.msra.mxu0 %v33
    %55 = vmatprep.subr.mxu0 0.0
    %56 = vmatpush1.msra.mxu0 %v34
    %57 = vmatprep.subr.mxu0 0.0
    %58 = vmatpush1.msra.mxu0 %v35
    %59 = vmatprep.subr.mxu0 0.0
    %60 = vmatpush1.msra.mxu0 0.0
    %61 = vmatprep.subr.mxu0 0.0
    %62 = vmatpush1.msra.mxu0 0.0
    %63 = vmatprep.subr.mxu0 0.0
    %64 = vmatpush1.msra.mxu0 0.0
    %65 = vmatprep.subr.mxu0 0.0
    %66 = vmatpush1.msra.mxu0 0.0
    %67 = vmatprep.subr.mxu0 0.0
    %68 = vmatpush1.msra.mxu0 0.0
    %69 = vmatprep.subr.mxu0 0.0
    %70 = vmatpush1.msra.mxu0 0.0
    %71 = vmatprep.subr.mxu0 0.0
    %72 = vmatpush1.msra.mxu0 0.0
    %73 = vmatprep.subr.mxu0 0.0
    %74 = vmatpush1.msra.mxu0 0.0
    %75 = vmatprep.subr.mxu0 0.0
    %76 = vmatpush1.msra.mxu0 0.0
    %77 = vmatprep.subr.mxu0 0.0
    %78 = vmatpush1.msra.mxu0 0.0
    %79 = vmatprep.subr.mxu0 0.0
    %80 = vmatpush1.msra.mxu0 0.0
    %81 = vmatprep.subr.mxu0 0.0
    %82 = vmatpush1.msra.mxu0 0.0
    %83 = vmatprep.subr.mxu0 0.0
    %84 = vmatpush1.msra.mxu0 0.0
    %85 = vmatprep.subr.mxu0 0.0
    %86 = vmatpush1.msra.mxu0 0.0
    %87 = vmatprep.subr.mxu0 0.0
    %88 = vmatpush1.msra.mxu0 0.0
    %89 = vmatprep.subr.mxu0 0.0
    %90 = vmatpush1.msra.mxu0 0.0
    %91 = vmatprep.subr.mxu0 0.0
    %92 = vmatpush1.msra.mxu0 0.0
    %93 = vmatprep.subr.mxu0 0.0
    %94 = vmatpush1.msra.mxu0 0.0
    %95 = vmatprep.subr.mxu0 0.0
    %96 = vmatpush1.msra.mxu0 0.0
    %97 = vmatprep.subr.mxu0 0.0
    %98 = vmatpush1.msra.mxu0 0.0
    %99 = vmatprep.subr.mxu0 0.0
    %100 = vmatpush1.msra.mxu0 0.0
    %101 = vmatprep.subr.mxu0 0.0
    %102 = vmatpush1.msra.mxu0 0.0
    %103 = vmatprep.subr.mxu0 0.0
    %104 = vmatpush1.msra.mxu0 0.0
    %105 = vmatprep.subr.mxu0 0.0
    %106 = vmatpush1.msra.mxu0 0.0
    %107 = vmatprep.mubr.f32.mxu0 0.0
    %108 = vmatmul.mubr.f32.gmra.mrb[0].mxu0 %v38
    %v109 = vpop.f32.mrb[0].mxu0
    %v110 = vadd.f32 0.0, %v109
    %v111 = vpop.f32.mrb[0].mxu0
    %112 = vmatprep.mubr.f32.mxu0 0.0
    %113 = vmatmul.mubr.f32.gmra.mrb[0].mxu0 %v41
    %v114 = vpop.f32.mrb[0].mxu0
    %v115 = vadd.f32 0.0, %v114
    %v116 = vpop.f32.mrb[0].mxu0
    %117 = vdwg.mxu0
    %v118 = vmul.f32 %v110, 5.656854
    %v119 = vmul.f32 %v115, 5.656854
    %vm120 = vcmask 261120
    %121 = vst.msk [vmem:[#allocation2] sm:$0xff] %vm120, %v118
    %122 = vst.msk [vmem:[#allocation2 + $0x8] sm:$0xff] %vm120, %v119
    // Predicated region
    $region10: #{tpu_custom_call.1} parent=1 // pred_check
      _
    $region11: #{tpu_custom_call.1} parent=1 // pred_check_branch
      %124 = sbr.rel (0) target = $region13
    $region12: #{tpu_custom_call.1} parent=1 // pred_region
      %s126 = ssub.s32 256, 256
      %127 = vsyncadd [#allocation3], %s126
      %s128 = sshll.u32 [#allocation2], 4
      %s129 = int_to_ptr.vmem [resolvable:$true] %s128
      %134 = dma.vmem_to_hbm [thread:$0]  %s129, 256, %s2, [#allocation3], 128, 128, 8
    $region13: #{tpu_custom_call.1} parent=1 // pred_fallthru
      _
    // Predicated region
    $region14: #{tpu_custom_call.1} parent=1 // pred_check
      _
    $region15: #{tpu_custom_call.1} parent=1 // pred_check_branch
      %136 = sbr.rel (0) target = $region17
    $region16: #{tpu_custom_call.1} parent=1 // pred_region
      %137 = dma.done [#allocation3], 256
    $region17: #{tpu_custom_call.1} parent=1 // pred_fallthru
      _
    %138 = vsyncpa [#allocation3], 1

</llo_original>
